<compile_context>
chip_gen: v7x
topology: tpu7x:2x2x1
jax: 0.10.0
libtpu: 0.0.40
codegen_flags: <defaults>
</compile_context>

<pallas_src>
import functools
import math

import jax
import jax.numpy as jnp
from jax.experimental import pallas as pl
from jax.experimental.pallas import tpu as pltpu

LANE = 128
SUBLANE = 8
BF16_SUBLANE = 16           # bf16 packs 2 rows per 32-bit sublane
NEG_BIG = -1e30
# Keep the full (B_pad, V_pad) f32 log-prob block VMEM-resident (in-kernel
# finalize) only while it stays far under every generation's VMEM (v7x: 64 MiB).
RESIDENT_LOGP_MAX_BYTES = 16 * 1024 * 1024


def _round_up(x, m):
    return (x + m - 1) // m * m


def _cdiv(a, b):
    return -(-a // b)


def decoder_rnn_kernel(x_ref, h_ref,
                       w_rz_ref, b_rz_ref,
                       w_in_ref, b_in_ref,
                       w_hn_ref, b_hn_ref,
                       w_out_ref, b_out_ref,
                       logp_ref, lse_ref, h_new_ref,
                       xh_s, hproj_s, m_s, l_s,
                       *, b, e, h, e_pad, h_pad, tile_v, resident_logp):
    """Grid axis 0 = vocab tiles. GRU runs at tile 0; every tile does one slab of
    the output projection + online log-softmax; last tile finalizes."""
    j = pl.program_id(0)
    last = pl.num_programs(0) - 1

    # ---------------- GRU step (once, at the first vocab tile) ----------------
    @pl.when(j == 0)
    def _gru_step():
        # Pad / pack the unpadded (B, E) input and (B, H) hidden into VMEM
        # scratch in-kernel (no per-step XLA padding/concat ops in the wrapper).
        xh_s[...] = jnp.zeros_like(xh_s)
        xh_s[:b, :e] = x_ref[...]
        xh_s[:b, e_pad:e_pad + h] = h_ref[...]

        xh_f32 = xh_s[...]                                 # (B_pad, E_pad+H_pad) f32
        xh = xh_f32.astype(jnp.bfloat16)                   # MXU operand
        h_prev = xh_f32[:, e_pad:]                         # padded previous hidden, f32

        # Fused r/z gates: one MXU pass over [x | h] @ W_rz (2*H_pad columns).
        rz = jnp.dot(xh, w_rz_ref[...],
                     preferred_element_type=jnp.float32) + b_rz_ref[...]
        r = jax.nn.sigmoid(rz[:, :h_pad])                  # lane-aligned slices
        z = jax.nn.sigmoid(rz[:, h_pad:])

        # n gate: PyTorch GRU applies r only to the hidden contribution.
        gi_n = jnp.dot(xh[:, :e_pad], w_in_ref[...],
                       preferred_element_type=jnp.float32) + b_in_ref[...]
        gh_n = jnp.dot(xh[:, e_pad:], w_hn_ref[...],
                       preferred_element_type=jnp.float32) + b_hn_ref[...]
        n = jnp.tanh(gi_n + r * gh_n)

        h_new = (1.0 - z) * n + z * h_prev                 # f32 elementwise (v5e-safe)
        h_new_ref[...] = h_new[:b, :h].astype(h_new_ref.dtype)        # unpadded out
        hproj_s[...] = h_new[:, :hproj_s.shape[1]].astype(hproj_s.dtype)

        # Init online-softmax accumulators.
        m_s[...] = jnp.full_like(m_s, -jnp.inf)
        l_s[...] = jnp.zeros_like(l_s)

    # ------------- output-projection tile + online log-softmax ---------------
    # hproj_s is (B_pad, H_ct) with H_ct = real hidden rows (16) -> W_out tiles
    # stream only the real contraction rows from HBM.
    logits = jnp.dot(hproj_s[...], w_out_ref[...],
                     preferred_element_type=jnp.float32) + b_out_ref[...]

    m_old = m_s[...]
    m_new = jnp.maximum(m_old, jnp.max(logits, axis=1, keepdims=True))
    l_s[...] = (l_s[...] * jnp.exp(m_old - m_new)
                + jnp.sum(jnp.exp(logits - m_new), axis=1, keepdims=True))
    m_s[...] = m_new

    if resident_logp:
        off = pl.multiple_of(j * tile_v, tile_v)
        logp_ref[:, pl.ds(off, tile_v)] = logits            # raw logits for now
    else:
        logp_ref[...] = logits                               # streamed raw-logit tile

    # ------------- finalize at the last vocab tile ---------------------------
    @pl.when(j == last)
    def _finalize():
        lse = m_s[...] + jnp.log(l_s[...])
        lse_ref[...] = lse
        if resident_logp:
            logp_ref[...] = logp_ref[...] - lse              # in-kernel log-softmax


def pack_params(p, embedding_size, hidden_size, output_size, *, max_tile_v=8192):
    """Repack PyTorch-convention GRU/Linear params into padded, bf16, MXU-friendly
    layout (gate order r|z|n, weights transposed to (in, out)). W_out keeps its
    real contraction rows (padded only to the bf16 sublane minimum)."""
    E, H, V = embedding_size, hidden_size, output_size
    E_pad = _round_up(E, LANE)
    H_pad = _round_up(H, LANE)
    H_ct = _round_up(H, BF16_SUBLANE)          # streamed contraction rows (16, not 128)

    # Vocab tiling: up to max_tile_v lanes per tile, padded minimally. Per-tile
    # streamed bytes at H_ct=16 are tiny on every generation, so larger tiles just
    # amortize the ~0.35 us per-grid-step overhead.
    V_128 = _round_up(V, LANE)
    num_tiles = max(1, _cdiv(V_128, max_tile_v))
    tile_v = _round_up(_cdiv(V_128, num_tiles), LANE)
    V_pad = num_tiles * tile_v

    w_ih, w_hh = p["w_ih"], p["w_hh"]              # (3H, E), (3H, H)
    b_ih, b_hh = p["b_ih"], p["b_hh"]              # (3H,)
    w_out, b_out = p["w_out"], p["b_out"]          # (V, H), (V,)
    f32, bf16 = jnp.float32, jnp.bfloat16

    # Fused r/z weight: rows = [x features | h features], cols = [r gate | z gate].
    w_rz = jnp.zeros((E_pad + H_pad, 2 * H_pad), f32)
    w_rz = w_rz.at[:E, :H].set(w_ih[0:H].T)
    w_rz = w_rz.at[:E, H_pad:H_pad + H].set(w_ih[H:2 * H].T)
    w_rz = w_rz.at[E_pad:E_pad + H, :H].set(w_hh[0:H].T)
    w_rz = w_rz.at[E_pad:E_pad + H, H_pad:H_pad + H].set(w_hh[H:2 * H].T)

    b_rz = jnp.zeros((1, 2 * H_pad), f32)
    b_rz = b_rz.at[0, :H].set(b_ih[0:H] + b_hh[0:H])
    b_rz = b_rz.at[0, H_pad:H_pad + H].set(b_ih[H:2 * H] + b_hh[H:2 * H])

    w_in = jnp.zeros((E_pad, H_pad), f32).at[:E, :H].set(w_ih[2 * H:].T)
    b_in = jnp.zeros((1, H_pad), f32).at[0, :H].set(b_ih[2 * H:])
    w_hn = jnp.zeros((H_pad, H_pad), f32).at[:H, :H].set(w_hh[2 * H:].T)
    b_hn = jnp.zeros((1, H_pad), f32).at[0, :H].set(b_hh[2 * H:])

    # Streamed projection weight: (H_ct, V_pad) bf16.
    # TODO(synk): optional int8 (v5e/v6e) / fp8 (v7x) W_out would halve this again.
    w_out_p = jnp.zeros((H_ct, V_pad), f32).at[:H, :V].set(w_out.T)
    # Padded vocab lanes get a huge negative bias so they drop out of the softmax.
    b_out_p = jnp.full((1, V_pad), NEG_BIG, f32).at[0, :V].set(b_out)

    return dict(
        w_rz=w_rz.astype(bf16), b_rz=b_rz,
        w_in=w_in.astype(bf16), b_in=b_in,
        w_hn=w_hn.astype(bf16), b_hn=b_hn,
        w_out=w_out_p.astype(bf16), b_out=b_out_p,
        dims=dict(E=E, H=H, V=V, E_pad=E_pad, H_pad=H_pad, H_ct=H_ct,
                  V_pad=V_pad, tile_v=tile_v),
    )


def decoder_rnn_forward(x, hidden, packed):
    """Matches DecoderRNN.forward with use_same_embedding=True.

    x:      (1, B, E) already-embedded input (seq_len == 1)
    hidden: (1, B, H)
    returns (log_probs (B, V), hidden (1, B, H))
    """
    d = packed["dims"]
    E, H, V = d["E"], d["H"], d["V"]
    E_pad, H_pad, H_ct = d["E_pad"], d["H_pad"], d["H_ct"]
    V_pad, tile_v = d["V_pad"], d["tile_v"]

    assert x.shape[0] == 1 and hidden.shape[0] == 1, "decoder step has seq_len == 1"
    # NOTE: multiple sequences/beams should be batched here so the matmul M dim
    # grows toward the MXU row count; extra rows are nearly free while the kernel
    # is bound on streaming W_out.
    B = x.shape[1]
    B_pad = _round_up(max(B, SUBLANE), SUBLANE)
    num_v_tiles = V_pad // tile_v
    resident_logp = (B_pad * V_pad * 4) <= RESIDENT_LOGP_MAX_BYTES

    kernel = functools.partial(
        decoder_rnn_kernel, b=B, e=E, h=H, e_pad=E_pad, h_pad=H_pad,
        tile_v=tile_v, resident_logp=resident_logp)

    const2 = lambda j: (0, 0)
    in_specs = [
        pl.BlockSpec((None, B, E), lambda j: (0, 0, 0)),      # x, unpadded (resident)
        pl.BlockSpec((None, B, H), lambda j: (0, 0, 0)),      # hidden, unpadded
        pl.BlockSpec((E_pad + H_pad, 2 * H_pad), const2),     # W_rz (resident)
        pl.BlockSpec((1, 2 * H_pad), const2),                 # b_rz
        pl.BlockSpec((E_pad, H_pad), const2),                 # W_in (n gate, x)
        pl.BlockSpec((1, H_pad), const2),                     # b_in
        pl.BlockSpec((H_pad, H_pad), const2),                 # W_hn (n gate, h)
        pl.BlockSpec((1, H_pad), const2),                     # b_hn
        pl.BlockSpec((H_ct, tile_v), lambda j: (0, j)),       # W_out tile (streamed)
        pl.BlockSpec((1, tile_v), lambda j: (0, j)),          # b_out tile (streamed)
    ]
    logp_spec = (pl.BlockSpec((B_pad, V_pad), const2) if resident_logp
                 else pl.BlockSpec((B_pad, tile_v), lambda j: (0, j)))
    out_specs = (
        logp_spec,                                            # logits / logp
        pl.BlockSpec((B_pad, 1), const2),                     # logsumexp
        pl.BlockSpec((None, B, H), lambda j: (0, 0, 0)),      # h_new, unpadded
    )
    scratch_shapes = [
        pltpu.VMEM((B_pad, E_pad + H_pad), jnp.float32),      # padded [x|h]
        pltpu.VMEM((B_pad, H_ct), jnp.bfloat16),              # h_new as MXU operand
        pltpu.VMEM((B_pad, 1), jnp.float32),                  # online-softmax max
        pltpu.VMEM((B_pad, 1), jnp.float32),                  # online-softmax sum
    ]

    inputs = (x, hidden, packed["w_rz"], packed["b_rz"], packed["w_in"],
              packed["b_in"], packed["w_hn"], packed["b_hn"],
              packed["w_out"], packed["b_out"])

    # Advisory cost estimate in real (unpadded) dims.
    flops = int(2 * B * ((E + H) * 2 * H + E * H + H * H + H * V))
    transcendentals = int(B * (3 * H + V + 1))
    bytes_accessed = int(sum(int(a.size) * a.dtype.itemsize for a in inputs)
                         + B_pad * V_pad * 4 + B_pad * 4 + B * H * 4)

    # VMEM budget: resident blocks single-buffered; only streamed tiles (and the
    # streamed logits output) double-buffered.
    resident_in_bytes = sum(int(a.size) * a.dtype.itemsize for a in inputs[:8])
    streamed_tile_bytes = H_ct * tile_v * 2 + tile_v * 4
    logp_buf_bytes = (B_pad * V_pad * 4 if resident_logp
                      else 2 * B_pad * tile_v * 4)
    scratch_bytes = (B_pad * (E_pad + H_pad) * 4 + B_pad * H_ct * 2
                     + 2 * B_pad * 4)
    small_out_bytes = B_pad * 4 + B * H * 4
    vmem_est = (resident_in_bytes + 2 * streamed_tile_bytes + logp_buf_bytes
                + scratch_bytes + small_out_bytes)
    try:
        vmem_cap = int(pltpu.get_tpu_info().vmem_capacity_bytes) * 7 // 8
    except Exception:
        vmem_cap = 48 * 1024 * 1024
    vmem_limit = int(min(max(2 * vmem_est, 8 * 1024 * 1024), vmem_cap))

    logp_p, lse_p, h_new = pl.pallas_call(
        kernel,
        out_shape=(
            jax.ShapeDtypeStruct((B_pad, V_pad), jnp.float32),
            jax.ShapeDtypeStruct((B_pad, 1), jnp.float32),
            jax.ShapeDtypeStruct((1, B, H), jnp.float32),
        ),
        grid_spec=pltpu.PrefetchScalarGridSpec(
            num_scalar_prefetch=0,
            grid=(num_v_tiles,),
            in_specs=in_specs,
            out_specs=out_specs,
            scratch_shapes=scratch_shapes,
        ),
        cost_estimate=pl.CostEstimate(flops=flops,
                                      transcendentals=transcendentals,
                                      bytes_accessed=bytes_accessed),
        compiler_params=pltpu.CompilerParams(
            dimension_semantics=("arbitrary",),   # online-softmax carry across tiles
            vmem_limit_bytes=vmem_limit,
        ),
    )(*inputs)

    if resident_logp:
        logp = logp_p[:B, :V]                    # log-softmax finalized in-kernel
    else:
        logp = logp_p[:B, :V] - lse_p[:B]        # trailing "- logsumexp" correction
    return logp, h_new


def init_torch_params(key, embedding_size, hidden_size, output_size):
    """Deterministic synthetic params in PyTorch convention (nn.GRU / nn.Linear)."""
    E, H, V = embedding_size, hidden_size, output_size
    ks = jax.random.split(key, 6)
    k = 1.0 / math.sqrt(H)
    u = lambda kk, shape: jax.random.uniform(kk, shape, jnp.float32, -k, k)
    return dict(
        w_ih=u(ks[0], (3 * H, E)),     # weight_ih_l0, gate order [r|z|n]
        w_hh=u(ks[1], (3 * H, H)),     # weight_hh_l0
        b_ih=u(ks[2], (3 * H,)),
        b_hh=u(ks[3], (3 * H,)),
        w_out=u(ks[4], (V, H)),        # nn.Linear(H, V).weight
        b_out=u(ks[5], (V,)),
    )


def decoder_rnn_reference(x, hidden, p):
    """Pure-JAX reference mirroring the kernel's bf16-weight / f32-accumulate math."""
    H = hidden.shape[2]
    bf = lambda a: a.astype(jnp.bfloat16)
    x2, h = x[0], hidden[0]
    gi = jnp.dot(bf(x2), bf(p["w_ih"].T), preferred_element_type=jnp.float32) + p["b_ih"]
    gh = jnp.dot(bf(h), bf(p["w_hh"].T), preferred_element_type=jnp.float32) + p["b_hh"]
    r = jax.nn.sigmoid(gi[:, :H] + gh[:, :H])
    z = jax.nn.sigmoid(gi[:, H:2 * H] + gh[:, H:2 * H])
    n = jnp.tanh(gi[:, 2 * H:] + r * gh[:, 2 * H:])
    h_new = (1.0 - z) * n + z * h
    logits = jnp.dot(bf(h_new), bf(p["w_out"].T),
                     preferred_element_type=jnp.float32) + p["b_out"]
    return jax.nn.log_softmax(logits, axis=1), h_new[None]


if __name__ == "__main__":
    embedding_size = 16
    hidden_size = 16
    output_size = 32
    batch = 4

    key = jax.random.PRNGKey(0)
    kx, kh, kp = jax.random.split(key, 3)

    # input: (seq=1, B, E) already-embedded tokens (use_same_embedding=True).
    x = jax.random.normal(kx, (1, batch, embedding_size), jnp.float32)
    hidden = jax.random.normal(kh, (1, batch, hidden_size), jnp.float32)
    torch_params = init_torch_params(kp, embedding_size, hidden_size, output_size)
    packed = pack_params(torch_params, embedding_size, hidden_size, output_size)

    logp, h_new = decoder_rnn_forward(x, hidden, packed)
    jax.block_until_ready((logp, h_new))

    logp_ref, h_ref = decoder_rnn_reference(x, hidden, torch_params)
    assert logp.shape == (batch, output_size)
    assert h_new.shape == (1, batch, hidden_size)
    assert jnp.allclose(h_new, h_ref, atol=1e-4, rtol=1e-4), \
        float(jnp.max(jnp.abs(h_new - h_ref)))
    assert jnp.allclose(logp, logp_ref, atol=5e-3, rtol=1e-2), \
        float(jnp.max(jnp.abs(logp - logp_ref)))
    # log-softmax rows must exponentiate to probability distributions.
    assert jnp.allclose(jnp.sum(jnp.exp(logp), axis=1), 1.0, atol=1e-3)

    print("KERNEL_OK")
</pallas_src>

<mosaic_0001>
module attributes {stable_mosaic.version = 11 : i64} {
  func.func @decoder_rnn_kernel(%arg0: i32, %arg1: memref<1x4x16xf32, #tpu.memory_space<vmem>>, %arg2: memref<1x4x16xf32, #tpu.memory_space<vmem>>, %arg3: memref<256x256xbf16, #tpu.memory_space<vmem>>, %arg4: memref<1x256xf32, #tpu.memory_space<vmem>>, %arg5: memref<128x128xbf16, #tpu.memory_space<vmem>>, %arg6: memref<1x128xf32, #tpu.memory_space<vmem>>, %arg7: memref<128x128xbf16, #tpu.memory_space<vmem>>, %arg8: memref<1x128xf32, #tpu.memory_space<vmem>>, %arg9: memref<16x128xbf16, #tpu.memory_space<vmem>>, %arg10: memref<1x128xf32, #tpu.memory_space<vmem>>, %arg11: memref<8x128xf32, #tpu.memory_space<vmem>>, %arg12: memref<8x1xf32, #tpu.memory_space<vmem>>, %arg13: memref<1x4x16xf32, #tpu.memory_space<vmem>>, %arg14: memref<8x256xf32, #tpu.memory_space<vmem>>, %arg15: memref<8x16xbf16, #tpu.memory_space<vmem>>, %arg16: memref<8x1xf32, #tpu.memory_space<vmem>>, %arg17: memref<8x1xf32, #tpu.memory_space<vmem>>) attributes {dimension_semantics = [#tpu.dimension_semantics<arbitrary>], iteration_bounds = array<i64: 1>, scalar_prefetch = 0 : i64, scratch_operands = 4 : i64, tpu.core_type = #tpu.core_type<tc>, window_params = [{pipeline_mode = #tpu.pipeline_mode<synchronous>, transform_indices = @transform_0, window_bounds = array<i64: 1, 4, 16>}, {pipeline_mode = #tpu.pipeline_mode<synchronous>, transform_indices = @transform_1, window_bounds = array<i64: 1, 4, 16>}, {pipeline_mode = #tpu.pipeline_mode<synchronous>, transform_indices = @transform_2, window_bounds = array<i64: 256, 256>}, {pipeline_mode = #tpu.pipeline_mode<synchronous>, transform_indices = @transform_3, window_bounds = array<i64: 1, 256>}, {pipeline_mode = #tpu.pipeline_mode<synchronous>, transform_indices = @transform_4, window_bounds = array<i64: 128, 128>}, {pipeline_mode = #tpu.pipeline_mode<synchronous>, transform_indices = @transform_5, window_bounds = array<i64: 1, 128>}, {pipeline_mode = #tpu.pipeline_mode<synchronous>, transform_indices = @transform_6, window_bounds = array<i64: 128, 128>}, {pipeline_mode = #tpu.pipeline_mode<synchronous>, transform_indices = @transform_7, window_bounds = array<i64: 1, 128>}, {transform_indices = @transform_8, window_bounds = array<i64: 16, 128>}, {transform_indices = @transform_9, window_bounds = array<i64: 1, 128>}, {pipeline_mode = #tpu.pipeline_mode<synchronous>, transform_indices = @transform_10, window_bounds = array<i64: 8, 128>}, {pipeline_mode = #tpu.pipeline_mode<synchronous>, transform_indices = @transform_11, window_bounds = array<i64: 8, 1>}, {pipeline_mode = #tpu.pipeline_mode<synchronous>, transform_indices = @transform_12, window_bounds = array<i64: 1, 4, 16>}]} {
    %c0_i32 = arith.constant 0 : i32
    %0 = arith.cmpi eq, %arg0, %c0_i32 : i32
    %1 = arith.extui %0 : i1 to i32
    %c0_i32_0 = arith.constant 0 : i32
    %2 = arith.cmpi ne, %1, %c0_i32_0 : i32
    scf.if %2 {
      %cst_19 = arith.constant 0.000000e+00 : f32
      %32 = vector.broadcast %cst_19 : f32 to vector<8x256xf32>
      %c0_20 = arith.constant 0 : index
      %c0_21 = arith.constant 0 : index
      %33 = vector.load %arg14[%c0_20, %c0_21] : memref<8x256xf32, #tpu.memory_space<vmem>>, vector<8x256xf32>
      tpu.vector_store %arg14[%c0_20, %c0_21], %32 {strides = array<i32>} : memref<8x256xf32, #tpu.memory_space<vmem>>, vector<8x256xf32>,
      %c0_22 = arith.constant 0 : index
      %c0_23 = arith.constant 0 : index
      %c0_24 = arith.constant 0 : index
      %34 = vector.load %arg1[%c0_22, %c0_23, %c0_24] : memref<1x4x16xf32, #tpu.memory_space<vmem>>, vector<1x4x16xf32>
      %35 = vector.shape_cast %34 : vector<1x4x16xf32> to vector<4x16xf32>
      %c0_25 = arith.constant 0 : index
      %c0_26 = arith.constant 0 : index
      %36 = vector.load %arg14[%c0_25, %c0_26] : memref<8x256xf32, #tpu.memory_space<vmem>>, vector<4x16xf32>
      tpu.vector_store %arg14[%c0_25, %c0_26], %35 {strides = array<i32>} : memref<8x256xf32, #tpu.memory_space<vmem>>, vector<4x16xf32>,
      %c0_27 = arith.constant 0 : index
      %c0_28 = arith.constant 0 : index
      %c0_29 = arith.constant 0 : index
      %37 = vector.load %arg2[%c0_27, %c0_28, %c0_29] : memref<1x4x16xf32, #tpu.memory_space<vmem>>, vector<1x4x16xf32>
      %38 = vector.shape_cast %37 : vector<1x4x16xf32> to vector<4x16xf32>
      %c0_30 = arith.constant 0 : index
      %c128 = arith.constant 128 : index
      %39 = vector.load %arg14[%c0_30, %c128] : memref<8x256xf32, #tpu.memory_space<vmem>>, vector<4x16xf32>
      tpu.vector_store %arg14[%c0_30, %c128], %38 {strides = array<i32>} : memref<8x256xf32, #tpu.memory_space<vmem>>, vector<4x16xf32>,
      %c0_31 = arith.constant 0 : index
      %c0_32 = arith.constant 0 : index
      %40 = vector.load %arg14[%c0_31, %c0_32] : memref<8x256xf32, #tpu.memory_space<vmem>>, vector<8x256xf32>
      %41 = arith.truncf %40 : vector<8x256xf32> to vector<8x256xbf16>
      %42 = vector.extract_strided_slice %40 {offsets = [0, 128], sizes = [8, 128], strides = [1, 1]} : vector<8x256xf32> to vector<8x128xf32>
      %c0_33 = arith.constant 0 : index
      %c0_34 = arith.constant 0 : index
      %43 = vector.load %arg3[%c0_33, %c0_34] : memref<256x256xbf16, #tpu.memory_space<vmem>>, vector<256x256xbf16>
      %cst_35 = arith.constant dense<0.000000e+00> : vector<8x256xf32>
      %44 = tpu.matmul %41, %43, %cst_35 {dimension_numbers = #tpu.dot_dimension_numbers<[1], [0], [0], [1], [0, 0, 1, 1], [], []>} : vector<8x256xbf16>, vector<256x256xbf16>, vector<8x256xf32> -> vector<8x256xf32>
      %c0_36 = arith.constant 0 : index
      %c0_37 = arith.constant 0 : index
      %45 = vector.load %arg4[%c0_36, %c0_37] : memref<1x256xf32, #tpu.memory_space<vmem>>, vector<1x256xf32>
      %46 = vector.broadcast %45 : vector<1x256xf32> to vector<8x256xf32>
      %47 = arith.addf %44, %46 : vector<8x256xf32>
      %48 = vector.extract_strided_slice %47 {offsets = [0, 0], sizes = [8, 128], strides = [1, 1]} : vector<8x256xf32> to vector<8x128xf32>
      %49 = arith.negf %48 : vector<8x128xf32>
      %50 = math.exp %49 : vector<8x128xf32>
      %cst_38 = arith.constant 1.000000e+00 : f32
      %51 = vector.broadcast %cst_38 : f32 to vector<8x128xf32>
      %52 = arith.addf %51, %50 : vector<8x128xf32>
      %53 = arith.divf %51, %52 : vector<8x128xf32>
      %54 = vector.extract_strided_slice %47 {offsets = [0, 128], sizes = [8, 128], strides = [1, 1]} : vector<8x256xf32> to vector<8x128xf32>
      %55 = arith.negf %54 : vector<8x128xf32>
      %56 = math.exp %55 : vector<8x128xf32>
      %cst_39 = arith.constant 1.000000e+00 : f32
      %57 = vector.broadcast %cst_39 : f32 to vector<8x128xf32>
      %58 = arith.addf %57, %56 : vector<8x128xf32>
      %59 = arith.divf %57, %58 : vector<8x128xf32>
      %60 = vector.extract_strided_slice %41 {offsets = [0, 0], sizes = [8, 128], strides = [1, 1]} : vector<8x256xbf16> to vector<8x128xbf16>
      %c0_40 = arith.constant 0 : index
      %c0_41 = arith.constant 0 : index
      %61 = vector.load %arg5[%c0_40, %c0_41] : memref<128x128xbf16, #tpu.memory_space<vmem>>, vector<128x128xbf16>
      %cst_42 = arith.constant dense<0.000000e+00> : vector<8x128xf32>
      %62 = tpu.matmul %60, %61, %cst_42 {dimension_numbers = #tpu.dot_dimension_numbers<[1], [0], [0], [1], [0, 0, 1, 1], [], []>} : vector<8x128xbf16>, vector<128x128xbf16>, vector<8x128xf32> -> vector<8x128xf32>
      %c0_43 = arith.constant 0 : index
      %c0_44 = arith.constant 0 : index
      %63 = vector.load %arg6[%c0_43, %c0_44] : memref<1x128xf32, #tpu.memory_space<vmem>>, vector<1x128xf32>
      %64 = vector.broadcast %63 : vector<1x128xf32> to vector<8x128xf32>
      %65 = arith.addf %62, %64 : vector<8x128xf32>
      %66 = vector.extract_strided_slice %41 {offsets = [0, 128], sizes = [8, 128], strides = [1, 1]} : vector<8x256xbf16> to vector<8x128xbf16>
      %c0_45 = arith.constant 0 : index
      %c0_46 = arith.constant 0 : index
      %67 = vector.load %arg7[%c0_45, %c0_46] : memref<128x128xbf16, #tpu.memory_space<vmem>>, vector<128x128xbf16>
      %cst_47 = arith.constant dense<0.000000e+00> : vector<8x128xf32>
      %68 = tpu.matmul %66, %67, %cst_47 {dimension_numbers = #tpu.dot_dimension_numbers<[1], [0], [0], [1], [0, 0, 1, 1], [], []>} : vector<8x128xbf16>, vector<128x128xbf16>, vector<8x128xf32> -> vector<8x128xf32>
      %c0_48 = arith.constant 0 : index
      %c0_49 = arith.constant 0 : index
      %69 = vector.load %arg8[%c0_48, %c0_49] : memref<1x128xf32, #tpu.memory_space<vmem>>, vector<1x128xf32>
      %70 = vector.broadcast %69 : vector<1x128xf32> to vector<8x128xf32>
      %71 = arith.addf %68, %70 : vector<8x128xf32>
      %72 = arith.mulf %53, %71 : vector<8x128xf32>
      %73 = arith.addf %65, %72 : vector<8x128xf32>
      %74 = math.tanh %73 : vector<8x128xf32>
      %cst_50 = arith.constant 1.000000e+00 : f32
      %75 = vector.broadcast %cst_50 : f32 to vector<8x128xf32>
      %76 = arith.subf %75, %59 : vector<8x128xf32>
      %77 = arith.mulf %76, %74 : vector<8x128xf32>
      %78 = arith.mulf %59, %42 : vector<8x128xf32>
      %79 = arith.addf %77, %78 : vector<8x128xf32>
      %80 = vector.extract_strided_slice %79 {offsets = [0, 0], sizes = [4, 16], strides = [1, 1]} : vector<8x128xf32> to vector<4x16xf32>
      %c0_51 = arith.constant 0 : index
      %c0_52 = arith.constant 0 : index
      %c0_53 = arith.constant 0 : index
      %81 = vector.load %arg13[%c0_51, %c0_52, %c0_53] : memref<1x4x16xf32, #tpu.memory_space<vmem>>, vector<1x4x16xf32>
      %82 = vector.shape_cast %81 : vector<1x4x16xf32> to vector<4x16xf32>
      %83 = vector.shape_cast %80 : vector<4x16xf32> to vector<1x4x16xf32>
      tpu.vector_store %arg13[%c0_51, %c0_52, %c0_53], %83 {strides = array<i32>} : memref<1x4x16xf32, #tpu.memory_space<vmem>>, vector<1x4x16xf32>,
      %84 = vector.extract_strided_slice %79 {offsets = [0, 0], sizes = [8, 16], strides = [1, 1]} : vector<8x128xf32> to vector<8x16xf32>
      %85 = arith.truncf %84 : vector<8x16xf32> to vector<8x16xbf16>
      %c0_54 = arith.constant 0 : index
      %c0_55 = arith.constant 0 : index
      %86 = vector.load %arg15[%c0_54, %c0_55] : memref<8x16xbf16, #tpu.memory_space<vmem>>, vector<8x16xbf16>
      tpu.vector_store %arg15[%c0_54, %c0_55], %85 {strides = array<i32>} : memref<8x16xbf16, #tpu.memory_space<vmem>>, vector<8x16xbf16>,
      %cst_56 = arith.constant 0xFF800000 : f32
      %87 = vector.broadcast %cst_56 : f32 to vector<8x1xf32>
      %c0_57 = arith.constant 0 : index
      %c0_58 = arith.constant 0 : index
      %88 = vector.load %arg16[%c0_57, %c0_58] : memref<8x1xf32, #tpu.memory_space<vmem>>, vector<8x1xf32>
      tpu.vector_store %arg16[%c0_57, %c0_58], %87 {strides = array<i32>} : memref<8x1xf32, #tpu.memory_space<vmem>>, vector<8x1xf32>,
      %cst_59 = arith.constant 0.000000e+00 : f32
      %89 = vector.broadcast %cst_59 : f32 to vector<8x1xf32>
      %c0_60 = arith.constant 0 : index
      %c0_61 = arith.constant 0 : index
      %90 = vector.load %arg17[%c0_60, %c0_61] : memref<8x1xf32, #tpu.memory_space<vmem>>, vector<8x1xf32>
      tpu.vector_store %arg17[%c0_60, %c0_61], %89 {strides = array<i32>} : memref<8x1xf32, #tpu.memory_space<vmem>>, vector<8x1xf32>,
    } else {
    }
    %c0 = arith.constant 0 : index
    %c0_1 = arith.constant 0 : index
    %3 = vector.load %arg15[%c0, %c0_1] : memref<8x16xbf16, #tpu.memory_space<vmem>>, vector<8x16xbf16>
    %c0_2 = arith.constant 0 : index
    %c0_3 = arith.constant 0 : index
    %4 = vector.load %arg9[%c0_2, %c0_3] : memref<16x128xbf16, #tpu.memory_space<vmem>>, vector<16x128xbf16>
    %cst = arith.constant dense<0.000000e+00> : vector<8x128xf32>
    %5 = tpu.matmul %3, %4, %cst {dimension_numbers = #tpu.dot_dimension_numbers<[1], [0], [0], [1], [0, 0, 1, 1], [], []>} : vector<8x16xbf16>, vector<16x128xbf16>, vector<8x128xf32> -> vector<8x128xf32>
    %c0_4 = arith.constant 0 : index
    %c0_5 = arith.constant 0 : index
    %6 = vector.load %arg10[%c0_4, %c0_5] : memref<1x128xf32, #tpu.memory_space<vmem>>, vector<1x128xf32>
    %7 = vector.broadcast %6 : vector<1x128xf32> to vector<8x128xf32>
    %8 = arith.addf %5, %7 : vector<8x128xf32>
    %c0_6 = arith.constant 0 : index
    %c0_7 = arith.constant 0 : index
    %9 = vector.load %arg16[%c0_6, %c0_7] : memref<8x1xf32, #tpu.memory_space<vmem>>, vector<8x1xf32>
    %cst_8 = arith.constant dense<0xFF800000> : vector<8xf32>
    %10 = vector.multi_reduction <maximumf>, %8, %cst_8 [1] : vector<8x128xf32> to vector<8xf32>
    %11 = vector.shape_cast %10 : vector<8xf32> to vector<8x1xf32>
    %12 = arith.maximumf %9, %11 : vector<8x1xf32>
    %c0_9 = arith.constant 0 : index
    %c0_10 = arith.constant 0 : index
    %13 = vector.load %arg17[%c0_9, %c0_10] : memref<8x1xf32, #tpu.memory_space<vmem>>, vector<8x1xf32>
    %14 = arith.subf %9, %12 : vector<8x1xf32>
    %15 = math.exp %14 : vector<8x1xf32>
    %16 = arith.mulf %13, %15 : vector<8x1xf32>
    %17 = vector.broadcast %12 : vector<8x1xf32> to vector<8x128xf32>
    %18 = arith.subf %8, %17 : vector<8x128xf32>
    %19 = math.exp %18 : vector<8x128xf32>
    %cst_11 = arith.constant dense<0.000000e+00> : vector<8xf32>
    %20 = vector.multi_reduction <add>, %19, %cst_11 [1] : vector<8x128xf32> to vector<8xf32>
    %21 = vector.shape_cast %20 : vector<8xf32> to vector<8x1xf32>
    %22 = arith.addf %16, %21 : vector<8x1xf32>
    %c0_12 = arith.constant 0 : index
    %c0_13 = arith.constant 0 : index
    %23 = vector.load %arg17[%c0_12, %c0_13] : memref<8x1xf32, #tpu.memory_space<vmem>>, vector<8x1xf32>
    tpu.vector_store %arg17[%c0_12, %c0_13], %22 {strides = array<i32>} : memref<8x1xf32, #tpu.memory_space<vmem>>, vector<8x1xf32>,
    %c0_14 = arith.constant 0 : index
    %c0_15 = arith.constant 0 : index
    %24 = vector.load %arg16[%c0_14, %c0_15] : memref<8x1xf32, #tpu.memory_space<vmem>>, vector<8x1xf32>
    tpu.vector_store %arg16[%c0_14, %c0_15], %12 {strides = array<i32>} : memref<8x1xf32, #tpu.memory_space<vmem>>, vector<8x1xf32>,
    %c128_i32 = arith.constant 128 : i32
    %25 = arith.muli %arg0, %c128_i32 : i32
    %26 = tpu.assume_multiple %25, 128 : i32
    %c0_16 = arith.constant 0 : index
    %27 = arith.index_cast %26 : i32 to index
    %28 = vector.load %arg11[%c0_16, %27] : memref<8x128xf32, #tpu.memory_space<vmem>>, vector<8x128xf32>
    tpu.vector_store %arg11[%c0_16, %27], %8 {strides = array<i32>} : memref<8x128xf32, #tpu.memory_space<vmem>>, vector<8x128xf32>,
    %c0_i32_17 = arith.constant 0 : i32
    %29 = arith.cmpi eq, %arg0, %c0_i32_17 : i32
    %30 = arith.extui %29 : i1 to i32
    %c0_i32_18 = arith.constant 0 : i32
    %31 = arith.cmpi ne, %30, %c0_i32_18 : i32
    scf.if %31 {
      %c0_19 = arith.constant 0 : index
      %c0_20 = arith.constant 0 : index
      %32 = vector.load %arg16[%c0_19, %c0_20] : memref<8x1xf32, #tpu.memory_space<vmem>>, vector<8x1xf32>
      %c0_21 = arith.constant 0 : index
      %c0_22 = arith.constant 0 : index
      %33 = vector.load %arg17[%c0_21, %c0_22] : memref<8x1xf32, #tpu.memory_space<vmem>>, vector<8x1xf32>
      %34 = math.log %33 : vector<8x1xf32>
      %35 = arith.addf %32, %34 : vector<8x1xf32>
      %c0_23 = arith.constant 0 : index
      %c0_24 = arith.constant 0 : index
      %36 = vector.load %arg12[%c0_23, %c0_24] : memref<8x1xf32, #tpu.memory_space<vmem>>, vector<8x1xf32>
      tpu.vector_store %arg12[%c0_23, %c0_24], %35 {strides = array<i32>} : memref<8x1xf32, #tpu.memory_space<vmem>>, vector<8x1xf32>,
      %c0_25 = arith.constant 0 : index
      %c0_26 = arith.constant 0 : index
      %37 = vector.load %arg11[%c0_25, %c0_26] : memref<8x128xf32, #tpu.memory_space<vmem>>, vector<8x128xf32>
      %38 = vector.broadcast %35 : vector<8x1xf32> to vector<8x128xf32>
      %39 = arith.subf %37, %38 : vector<8x128xf32>
      %c0_27 = arith.constant 0 : index
      %c0_28 = arith.constant 0 : index
      %40 = vector.load %arg11[%c0_27, %c0_28] : memref<8x128xf32, #tpu.memory_space<vmem>>, vector<8x128xf32>
      tpu.vector_store %arg11[%c0_27, %c0_28], %39 {strides = array<i32>} : memref<8x128xf32, #tpu.memory_space<vmem>>, vector<8x128xf32>,
    } else {
    }
    return
  }
  func.func @transform_0(%arg0: i32) -> (i32, i32, i32) {
    %c0_i32 = arith.constant 0 : i32
    %c0_i32_0 = arith.constant 0 : i32
    %c0_i32_1 = arith.constant 0 : i32
    %c0_i32_2 = arith.constant 0 : i32
    return %c0_i32, %c0_i32_0, %c0_i32_1 : i32, i32, i32
  }
  func.func @transform_1(%arg0: i32) -> (i32, i32, i32) {
    %c0_i32 = arith.constant 0 : i32
    %c0_i32_0 = arith.constant 0 : i32
    %c0_i32_1 = arith.constant 0 : i32
    %c0_i32_2 = arith.constant 0 : i32
    return %c0_i32, %c0_i32_0, %c0_i32_1 : i32, i32, i32
  }
  func.func @transform_2(%arg0: i32) -> (i32, i32) {
    %c0_i32 = arith.constant 0 : i32
    %c0_i32_0 = arith.constant 0 : i32
    %c0_i32_1 = arith.constant 0 : i32
    return %c0_i32, %c0_i32_0 : i32, i32
  }
  func.func @transform_3(%arg0: i32) -> (i32, i32) {
    %c0_i32 = arith.constant 0 : i32
    %c0_i32_0 = arith.constant 0 : i32
    %c0_i32_1 = arith.constant 0 : i32
    return %c0_i32, %c0_i32_0 : i32, i32
  }
  func.func @transform_4(%arg0: i32) -> (i32, i32) {
    %c0_i32 = arith.constant 0 : i32
    %c0_i32_0 = arith.constant 0 : i32
    %c0_i32_1 = arith.constant 0 : i32
    return %c0_i32, %c0_i32_0 : i32, i32
  }
  func.func @transform_5(%arg0: i32) -> (i32, i32) {
    %c0_i32 = arith.constant 0 : i32
    %c0_i32_0 = arith.constant 0 : i32
    %c0_i32_1 = arith.constant 0 : i32
    return %c0_i32, %c0_i32_0 : i32, i32
  }
  func.func @transform_6(%arg0: i32) -> (i32, i32) {
    %c0_i32 = arith.constant 0 : i32
    %c0_i32_0 = arith.constant 0 : i32
    %c0_i32_1 = arith.constant 0 : i32
    return %c0_i32, %c0_i32_0 : i32, i32
  }
  func.func @transform_7(%arg0: i32) -> (i32, i32) {
    %c0_i32 = arith.constant 0 : i32
    %c0_i32_0 = arith.constant 0 : i32
    %c0_i32_1 = arith.constant 0 : i32
    return %c0_i32, %c0_i32_0 : i32, i32
  }
  func.func @transform_8(%arg0: i32) -> (i32, i32) {
    %c0_i32 = arith.constant 0 : i32
    %c0_i32_0 = arith.constant 0 : i32
    return %c0_i32, %arg0 : i32, i32
  }
  func.func @transform_9(%arg0: i32) -> (i32, i32) {
    %c0_i32 = arith.constant 0 : i32
    %c0_i32_0 = arith.constant 0 : i32
    return %c0_i32, %arg0 : i32, i32
  }
  func.func @transform_10(%arg0: i32) -> (i32, i32) {
    %c0_i32 = arith.constant 0 : i32
    %c0_i32_0 = arith.constant 0 : i32
    %c0_i32_1 = arith.constant 0 : i32
    return %c0_i32, %c0_i32_0 : i32, i32
  }
  func.func @transform_11(%arg0: i32) -> (i32, i32) {
    %c0_i32 = arith.constant 0 : i32
    %c0_i32_0 = arith.constant 0 : i32
    %c0_i32_1 = arith.constant 0 : i32
    return %c0_i32, %c0_i32_0 : i32, i32
  }
  func.func @transform_12(%arg0: i32) -> (i32, i32, i32) {
    %c0_i32 = arith.constant 0 : i32
    %c0_i32_0 = arith.constant 0 : i32
    %c0_i32_1 = arith.constant 0 : i32
    %c0_i32_2 = arith.constant 0 : i32
    return %c0_i32, %c0_i32_0, %c0_i32_1 : i32, i32, i32
  }
}

</mosaic_0001>

<llo_original>
// kernel: tpu_custom_call.1
$region0: #{tpu_custom_call.1}
  #allocation0 [shape = 'u32[]', space=smem, size = 0x4, offset = 0x4, fixed_abs, tag = 'smem constant byte address 0x4 - core index']
  #allocation1 [shape = 'u32[144,128]{1,0:T(1,128)}', space=vmem, size = 0x12000, scoped, tag = 'internal scratch']
  #allocation2 [shape = 'f32[8,256]{1,0:T(8,128)}', space=vmem, size = 0x2000, scoped, tag = 'scratch operand']
  #allocation3 [shape = 'bf16[8,16]{1,0:T(8,128)(2,1)}', space=vmem, size = 0x800, scoped, tag = 'scratch operand']
  #allocation4 [shape = 'f32[8,1]{1,0:T(8,128)}', space=vmem, size = 0x1000, scoped, tag = 'scratch operand']
  #allocation5 [shape = 'f32[8,1]{1,0:T(8,128)}', space=vmem, size = 0x1000, scoped, tag = 'scratch operand']
  %s0 = inlined_call_operand.hbm [shape: f32[1,4,16], index: 0, kind: input, shape index: {}]
  %s1 = inlined_call_operand.hbm [shape: f32[1,4,16], index: 1, kind: input, shape index: {}]
  %s2 = inlined_call_operand.hbm [shape: bf16[256,256], index: 2, kind: input, shape index: {}]
  %s3 = inlined_call_operand.vmem [shape: f32[1,256], index: 3, kind: input, shape index: {}]
  %s4 = inlined_call_operand.hbm [shape: bf16[128,128], index: 4, kind: input, shape index: {}]
  %s5 = inlined_call_operand.vmem [shape: f32[1,128], index: 5, kind: input, shape index: {}]
  %s6 = inlined_call_operand.hbm [shape: bf16[128,128], index: 6, kind: input, shape index: {}]
  %s7 = inlined_call_operand.vmem [shape: f32[1,128], index: 7, kind: input, shape index: {}]
  %s8 = inlined_call_operand.vmem [shape: bf16[16,128], index: 8, kind: input, shape index: {}]
  %s9 = inlined_call_operand.vmem [shape: f32[1,128], index: 9, kind: input, shape index: {}]
  %s10 = inlined_call_operand.hbm [shape: f32[8,128], index: 10, kind: output, shape index: {0}]
  %s11 = inlined_call_operand.vmem [shape: f32[8,1], index: 11, kind: output, shape index: {1}]
  %s12 = inlined_call_operand.hbm [shape: f32[1,4,16], index: 12, kind: output, shape index: {2}]
  %13 = xla_tuple %s10, %s11, %s12
  %s14 = sld [smem:[#allocation0]]
  $region94: #{tpu_custom_call.1} parent=0
    _
  %s16 = ssub.s32 1, %s14
  %s17 = scalar_select 0, %s16, %s14
  $region1: #{tpu_custom_call.1} parent=0
    #allocation6 [shape = 'u8[2048]{0}', space=vmem, size = 0x800, scoped, tag = 'input window, operand 0, single buffered']
    #allocation7 [shape = 's32[1]{0}', space=sflag, size = 0x4, scoped, tag = 'scoped memory for tpu_custom_call.1']
    #allocation8 [shape = 's32[1]{0}', space=sflag, size = 0x4, scoped, tag = 'scoped memory for tpu_custom_call.1']
    #allocation9 [shape = 'u8[2048]{0}', space=vmem, size = 0x800, scoped, tag = 'input window, operand 1, single buffered']
    #allocation10 [shape = 's32[1]{0}', space=sflag, size = 0x4, scoped, tag = 'scoped memory for tpu_custom_call.1']
    #allocation11 [shape = 'u8[131072]{0}', space=vmem, size = 0x20000, scoped, tag = 'input window, operand 2, single buffered']
    #allocation12 [shape = 'u8[32768]{0}', space=vmem, size = 0x8000, scoped, tag = 'input window, operand 4, single buffered']
    #allocation13 [shape = 's32[1]{0}', space=sflag, size = 0x4, scoped, tag = 'scoped memory for tpu_custom_call.1']
    #allocation14 [shape = 'u8[32768]{0}', space=vmem, size = 0x8000, scoped, tag = 'input window, operand 6, single buffered']
    #allocation15 [shape = 'u8[4096]{0}', space=vmem, size = 0x1000, scoped, tag = 'output window, operand 0, single buffered']
    #allocation16 [shape = 'u8[2048]{0}', space=vmem, size = 0x800, scoped, tag = 'output window, operand 2, single buffered']
    #allocation17 [shape = 's32[1]{0}', space=sflag, size = 0x4, scoped, tag = 'scoped memory for tpu_custom_call.1']
    %18 = vsyncpa [#allocation7], 0
    %19 = vsyncpa [#allocation10], 0
    %20 = vsyncpa [#allocation13], 0
    %21 = vsyncpa [#allocation8], 0
    %22 = vsyncpa [#allocation17], 0
    // Predicated region
    $region2: #{tpu_custom_call.1} parent=1 // pred_check
      _
    $region3: #{tpu_custom_call.1} parent=1 // pred_check_branch
      %24 = sbr.rel (0) target = $region5
    $region4: #{tpu_custom_call.1} parent=1 // pred_region
      %s26 = ssub.s32 64, 64
      %27 = vsyncadd [#allocation7], %s26
      %s29 = sshll.u32 [#allocation6], 4
      %s30 = int_to_ptr.vmem [resolvable:$true] %s29
      %32 = dma.hbm_to_vmem [thread:$0]  %s0, 64, %s30, [#allocation7]
    $region5: #{tpu_custom_call.1} parent=1 // pred_fallthru
      _
    // Predicated region
    $region6: #{tpu_custom_call.1} parent=1 // pred_check
      _
    $region7: #{tpu_custom_call.1} parent=1 // pred_check_branch
      %34 = sbr.rel (0) target = $region9
    $region8: #{tpu_custom_call.1} parent=1 // pred_region
      %s36 = ssub.s32 64, 64
      %37 = vsyncadd [#allocation10], %s36
      %s39 = sshll.u32 [#allocation9], 4
      %s40 = int_to_ptr.vmem [resolvable:$true] %s39
      %42 = dma.hbm_to_vmem [thread:$0]  %s1, 64, %s40, [#allocation10]
    $region9: #{tpu_custom_call.1} parent=1 // pred_fallthru
      _
    // Predicated region
    $region10: #{tpu_custom_call.1} parent=1 // pred_check
      _
    $region11: #{tpu_custom_call.1} parent=1 // pred_check_branch
      %44 = sbr.rel (0) target = $region13
    $region12: #{tpu_custom_call.1} parent=1 // pred_region
      %s46 = ssub.s32 4096, 4096
      %47 = vsyncadd [#allocation10], %s46
      %s48 = sshll.u32 [#allocation11], 4
      %s49 = int_to_ptr.vmem [resolvable:$true] %s48
      %54 = dma.hbm_to_vmem [thread:$0]  %s2, 4096, %s49, [#allocation10], 128, 128, 8
    $region13: #{tpu_custom_call.1} parent=1 // pred_fallthru
      _
    // Predicated region
    $region14: #{tpu_custom_call.1} parent=1 // pred_check
      _
    $region15: #{tpu_custom_call.1} parent=1 // pred_check_branch
      %56 = sbr.rel (0) target = $region17
    $region16: #{tpu_custom_call.1} parent=1 // pred_region
      _
    $region17: #{tpu_custom_call.1} parent=1 // pred_fallthru
      _
    // Predicated region
    $region18: #{tpu_custom_call.1} parent=1 // pred_check
      _
    $region19: #{tpu_custom_call.1} parent=1 // pred_check_branch
      %58 = sbr.rel (0) target = $region21
    $region20: #{tpu_custom_call.1} parent=1 // pred_region
      %s60 = ssub.s32 1024, 1024
      %61 = vsyncadd [#allocation13], %s60
      %s62 = sshll.u32 [#allocation12], 4
      %s63 = int_to_ptr.vmem [resolvable:$true] %s62
      %68 = dma.hbm_to_vmem [thread:$0]  %s4, 1024, %s63, [#allocation13], 64, 64, 4
    $region21: #{tpu_custom_call.1} parent=1 // pred_fallthru
      _
    // Predicated region
    $region22: #{tpu_custom_call.1} parent=1 // pred_check
      _
    $region23: #{tpu_custom_call.1} parent=1 // pred_check_branch
      %70 = sbr.rel (0) target = $region25
    $region24: #{tpu_custom_call.1} parent=1 // pred_region
      _
    $region25: #{tpu_custom_call.1} parent=1 // pred_fallthru
      _
    // Predicated region
    $region26: #{tpu_custom_call.1} parent=1 // pred_check
      _
    $region27: #{tpu_custom_call.1} parent=1 // pred_check_branch
      %72 = sbr.rel (0) target = $region29
    $region28: #{tpu_custom_call.1} parent=1 // pred_region
      %s74 = ssub.s32 1024, 1024
      %75 = vsyncadd [#allocation13], %s74
      %s76 = sshll.u32 [#allocation14], 4
      %s77 = int_to_ptr.vmem [resolvable:$true] %s76
      %82 = dma.hbm_to_vmem [thread:$0]  %s6, 1024, %s77, [#allocation13], 64, 64, 4
    $region29: #{tpu_custom_call.1} parent=1 // pred_fallthru
      _
    // Predicated region
    $region30: #{tpu_custom_call.1} parent=1 // pred_check
      _
    $region31: #{tpu_custom_call.1} parent=1 // pred_check_branch
      %84 = sbr.rel (0) target = $region33
    $region32: #{tpu_custom_call.1} parent=1 // pred_region
      _
    $region33: #{tpu_custom_call.1} parent=1 // pred_fallthru
      _
    // Predicated region
    $region34: #{tpu_custom_call.1} parent=1 // pred_check
      _
    $region35: #{tpu_custom_call.1} parent=1 // pred_check_branch
      %86 = sbr.rel (0) target = $region37
    $region36: #{tpu_custom_call.1} parent=1 // pred_region
      _
    $region37: #{tpu_custom_call.1} parent=1 // pred_fallthru
      _
    // Predicated region
    $region38: #{tpu_custom_call.1} parent=1 // pred_check
      _
    $region39: #{tpu_custom_call.1} parent=1 // pred_check_branch
      %88 = sbr.rel (0) target = $region41
    $region40: #{tpu_custom_call.1} parent=1 // pred_region
      _
    $region41: #{tpu_custom_call.1} parent=1 // pred_fallthru
      _
    // Predicated region
    $region42: #{tpu_custom_call.1} parent=1 // pred_check
      _
    $region43: #{tpu_custom_call.1} parent=1 // pred_check_branch
      %90 = sbr.rel (0) target = $region45
    $region44: #{tpu_custom_call.1} parent=1 // pred_region
      %91 = dma.done [#allocation7], 64
    $region45: #{tpu_custom_call.1} parent=1 // pred_fallthru
      _
    // Predicated region
    $region46: #{tpu_custom_call.1} parent=1 // pred_check
      _
    $region47: #{tpu_custom_call.1} parent=1 // pred_check_branch
      %93 = sbr.rel (0) target = $region49
    $region48: #{tpu_custom_call.1} parent=1 // pred_region
      %94 = dma.done [#allocation10], 64
    $region49: #{tpu_custom_call.1} parent=1 // pred_fallthru
      _
    // Predicated region
    $region50: #{tpu_custom_call.1} parent=1 // pred_check
      _
    $region51: #{tpu_custom_call.1} parent=1 // pred_check_branch
      %96 = sbr.rel (0) target = $region53
    $region52: #{tpu_custom_call.1} parent=1 // pred_region
      %97 = dma.done [#allocation10], 4096
    $region53: #{tpu_custom_call.1} parent=1 // pred_fallthru
      _
    // Predicated region
    $region54: #{tpu_custom_call.1} parent=1 // pred_check
      _
    $region55: #{tpu_custom_call.1} parent=1 // pred_check_branch
      %99 = sbr.rel (0) target = $region57
    $region56: #{tpu_custom_call.1} parent=1 // pred_region
      %100 = dma.done [#allocation13], 1024
    $region57: #{tpu_custom_call.1} parent=1 // pred_fallthru
      _
    // Predicated region
    $region58: #{tpu_custom_call.1} parent=1 // pred_check
      _
    $region59: #{tpu_custom_call.1} parent=1 // pred_check_branch
      %102 = sbr.rel (0) target = $region61
    $region60: #{tpu_custom_call.1} parent=1 // pred_region
      %103 = dma.done [#allocation13], 1024
    $region61: #{tpu_custom_call.1} parent=1 // pred_fallthru
      _
    %p105 = scmp.eq.s32.totalorder 0, 0
    // Predicated region
    $region62: #{tpu_custom_call.1} parent=1 // pred_check
      %p106 = pneg %p105
    $region63: #{tpu_custom_call.1} parent=1 // pred_check_branch
      %108 = sbr.rel (%p106) target = $region65
    $region64: #{tpu_custom_call.1} parent=1 // pred_region
      %109 = vst [vmem:[#allocation2] sm:$0xff] 0.0
      %110 = vst [vmem:[#allocation2 + $0x8] sm:$0xff] 0.0
      %v111 = vld [vmem:[#allocation6] sm:$0xf]
      %vm112 = vcmask 125952
      %113 = vst.msk [vmem:[#allocation2] sm:$0xf] %vm112, %v111
      %v114 = vld [vmem:[#allocation9] sm:$0xf]
      %115 = vst.msk [vmem:[#allocation2 + $0x8] sm:$0xf] %vm112, %v114
      %v116 = vld [vmem:[#allocation2] sm:$0xff]
      %v117 = vld [vmem:[#allocation2 + $0x8] sm:$0xff]
      %v118 = vpack.c.bf16 %v116, %v116
      %v119 = vpack.c.bf16 %v117, %v117
      %v120 = vld [vmem:[#allocation11] sm:$0xff]
      %v121 = vld [vmem:[#allocation11 + $0x8] sm:$0xff]
      %v122 = vld [vmem:[#allocation11 + $0x10] sm:$0xff]
      %v123 = vld [vmem:[#allocation11 + $0x18] sm:$0xff]
      %v124 = vld [vmem:[#allocation11 + $0x20] sm:$0xff]
      %v125 = vld [vmem:[#allocation11 + $0x28] sm:$0xff]
      %v126 = vld [vmem:[#allocation11 + $0x30] sm:$0xff]
      %v127 = vld [vmem:[#allocation11 + $0x38] sm:$0xff]
      %v128 = vld [vmem:[#allocation11 + $0x40] sm:$0xff]
      %v129 = vld [vmem:[#allocation11 + $0x48] sm:$0xff]
      %v130 = vld [vmem:[#allocation11 + $0x50] sm:$0xff]
      %v131 = vld [vmem:[#allocation11 + $0x58] sm:$0xff]
      %v132 = vld [vmem:[#allocation11 + $0x60] sm:$0xff]
      %v133 = vld [vmem:[#allocation11 + $0x68] sm:$0xff]
      %v134 = vld [vmem:[#allocation11 + $0x70] sm:$0xff]
      %v135 = vld [vmem:[#allocation11 + $0x78] sm:$0xff]
      %v136 = vld [vmem:[#allocation11 + $0x80] sm:$0xff]
      %v137 = vld [vmem:[#allocation11 + $0x88] sm:$0xff]
      %v138 = vld [vmem:[#allocation11 + $0x90] sm:$0xff]
      %v139 = vld [vmem:[#allocation11 + $0x98] sm:$0xff]
      %v140 = vld [vmem:[#allocation11 + $0xa0] sm:$0xff]
      %v141 = vld [vmem:[#allocation11 + $0xa8] sm:$0xff]
      %v142 = vld [vmem:[#allocation11 + $0xb0] sm:$0xff]
      %v143 = vld [vmem:[#allocation11 + $0xb8] sm:$0xff]
      %v144 = vld [vmem:[#allocation11 + $0xc0] sm:$0xff]
      %v145 = vld [vmem:[#allocation11 + $0xc8] sm:$0xff]
      %v146 = vld [vmem:[#allocation11 + $0xd0] sm:$0xff]
      %v147 = vld [vmem:[#allocation11 + $0xd8] sm:$0xff]
      %v148 = vld [vmem:[#allocation11 + $0xe0] sm:$0xff]
      %v149 = vld [vmem:[#allocation11 + $0xe8] sm:$0xff]
      %v150 = vld [vmem:[#allocation11 + $0xf0] sm:$0xff]
      %v151 = vld [vmem:[#allocation11 + $0xf8] sm:$0xff]
      %v152 = vld [vmem:[%s3] sm:$0x3]
      %v154 = vlaneseq
      %v155 = vshrl.u32 %v154, 7
      %v156 = vsub.s32 0, %v155
      %v157 = vrot.slane %v152, %v156
      %v158 = vlaneseq
      %v159 = vshrl.u32 %v158, 7
      %v160 = vsub.s32 1, %v159
      %v161 = vrot.slane %v152, %v160
      %v196 = vunpack.c.l.b16 %v120
      %v197 = vunpack.c.h.b16 %v120
      %v198 = vunpack.c.l.b16 %v121
      %v199 = vunpack.c.h.b16 %v121
      %v200 = vunpack.c.l.b16 %v122
      %v201 = vunpack.c.h.b16 %v122
      %v202 = vunpack.c.l.b16 %v123
      %v203 = vunpack.c.h.b16 %v123
      %v204 = vunpack.c.l.b16 %v124
      %v205 = vunpack.c.h.b16 %v124
      %v206 = vunpack.c.l.b16 %v125
      %v207 = vunpack.c.h.b16 %v125
      %v208 = vunpack.c.l.b16 %v126
      %v209 = vunpack.c.h.b16 %v126
      %v210 = vunpack.c.l.b16 %v127
      %v211 = vunpack.c.h.b16 %v127
      %v212 = vunpack.c.l.b16 %v128
      %v213 = vunpack.c.h.b16 %v128
      %v214 = vunpack.c.l.b16 %v129
      %v215 = vunpack.c.h.b16 %v129
      %v216 = vunpack.c.l.b16 %v130
      %v217 = vunpack.c.h.b16 %v130
      %v218 = vunpack.c.l.b16 %v131
      %v219 = vunpack.c.h.b16 %v131
      %v220 = vunpack.c.l.b16 %v132
      %v221 = vunpack.c.h.b16 %v132
      %v222 = vunpack.c.l.b16 %v133
      %v223 = vunpack.c.h.b16 %v133
      %v224 = vunpack.c.l.b16 %v134
      %v225 = vunpack.c.h.b16 %v134
      %v226 = vunpack.c.l.b16 %v135
      %v227 = vunpack.c.h.b16 %v135
      %v228 = vunpack.c.l.b16 %v136
      %v229 = vunpack.c.h.b16 %v136
      %v230 = vunpack.c.l.b16 %v137
      %v231 = vunpack.c.h.b16 %v137
      %v232 = vunpack.c.l.b16 %v138
      %v233 = vunpack.c.h.b16 %v138
      %v234 = vunpack.c.l.b16 %v139
      %v235 = vunpack.c.h.b16 %v139
      %v236 = vunpack.c.l.b16 %v140
      %v237 = vunpack.c.h.b16 %v140
      %v238 = vunpack.c.l.b16 %v141
      %v239 = vunpack.c.h.b16 %v141
      %v240 = vunpack.c.l.b16 %v142
      %v241 = vunpack.c.h.b16 %v142
      %v242 = vunpack.c.l.b16 %v143
      %v243 = vunpack.c.h.b16 %v143
      %v244 = vunpack.c.l.b16 %v144
      %v245 = vunpack.c.h.b16 %v144
      %v246 = vunpack.c.l.b16 %v145
      %v247 = vunpack.c.h.b16 %v145
      %v248 = vunpack.c.l.b16 %v146
      %v249 = vunpack.c.h.b16 %v146
      %v250 = vunpack.c.l.b16 %v147
      %v251 = vunpack.c.h.b16 %v147
      %v252 = vunpack.c.l.b16 %v148
      %v253 = vunpack.c.h.b16 %v148
      %v254 = vunpack.c.l.b16 %v149
      %v255 = vunpack.c.h.b16 %v149
      %v256 = vunpack.c.l.b16 %v150
      %v257 = vunpack.c.h.b16 %v150
      %v258 = vunpack.c.l.b16 %v151
      %v259 = vunpack.c.h.b16 %v151
      %v260 = vpack.c.b16 %v198, %v196
      %v261 = vpack.c.b16 %v199, %v197
      %v262 = vpack.c.b16 %v202, %v200
      %v263 = vpack.c.b16 %v203, %v201
      %v264 = vpack.c.b16 %v206, %v204
      %v265 = vpack.c.b16 %v207, %v205
      %v266 = vpack.c.b16 %v210, %v208
      %v267 = vpack.c.b16 %v211, %v209
      %v268 = vpack.c.b16 %v214, %v212
      %v269 = vpack.c.b16 %v215, %v213
      %v270 = vpack.c.b16 %v218, %v216
      %v271 = vpack.c.b16 %v219, %v217
      %v272 = vpack.c.b16 %v222, %v220
      %v273 = vpack.c.b16 %v223, %v221
      %v274 = vpack.c.b16 %v226, %v224
      %v275 = vpack.c.b16 %v227, %v225
      %v276 = vpack.c.b16 %v230, %v228
      %v277 = vpack.c.b16 %v231, %v229
      %v278 = vpack.c.b16 %v234, %v232
      %v279 = vpack.c.b16 %v235, %v233
      %v280 = vpack.c.b16 %v238, %v236
      %v281 = vpack.c.b16 %v239, %v237
      %v282 = vpack.c.b16 %v242, %v240
      %v283 = vpack.c.b16 %v243, %v241
      %v284 = vpack.c.b16 %v246, %v244
      %v285 = vpack.c.b16 %v247, %v245
      %v286 = vpack.c.b16 %v250, %v248
      %v287 = vpack.c.b16 %v251, %v249
      %v288 = vpack.c.b16 %v254, %v252
      %v289 = vpack.c.b16 %v255, %v253
      %v290 = vpack.c.b16 %v258, %v256
      %v291 = vpack.c.b16 %v259, %v257
      %324 = vmatprep.subr.bf16.mxu0 %v261
      %325 = vmatpush1.bf16.msra.mxu0 %v260
      %326 = vmatprep.subr.bf16.mxu0 %v263
      %327 = vmatpush1.bf16.msra.mxu0 %v262
      %328 = vmatprep.subr.bf16.mxu0 %v265
      %329 = vmatpush1.bf16.msra.mxu0 %v264
      %330 = vmatprep.subr.bf16.mxu0 %v267
      %331 = vmatpush1.bf16.msra.mxu0 %v266
      %332 = vmatprep.subr.bf16.mxu0 %v269
      %333 = vmatpush1.bf16.msra.mxu0 %v268
      %334 = vmatprep.subr.bf16.mxu0 %v271
      %335 = vmatpush1.bf16.msra.mxu0 %v270
      %336 = vmatprep.subr.bf16.mxu0 %v273
      %337 = vmatpush1.bf16.msra.mxu0 %v272
      %338 = vmatprep.subr.bf16.mxu0 %v275
      %339 = vmatpush1.bf16.msra.mxu0 %v274
      %340 = vmatprep.subr.bf16.mxu0 %v277
      %341 = vmatpush1.bf16.msra.mxu0 %v276
      %342 = vmatprep.subr.bf16.mxu0 %v279
      %343 = vmatpush1.bf16.msra.mxu0 %v278
      %344 = vmatprep.subr.bf16.mxu0 %v281
      %345 = vmatpush1.bf16.msra.mxu0 %v280
      %346 = vmatprep.subr.bf16.mxu0 %v283
      %347 = vmatpush1.bf16.msra.mxu0 %v282
      %348 = vmatprep.subr.bf16.mxu0 %v285
      %349 = vmatpush1.bf16.msra.mxu0 %v284
      %350 = vmatprep.subr.bf16.mxu0 %v287
      %351 = vmatpush1.bf16.msra.mxu0 %v286
      %352 = vmatprep.subr.bf16.mxu0 %v289
      %353 = vmatpush1.bf16.msra.mxu0 %v288
      %354 = vmatprep.subr.bf16.mxu0 %v291
      %355 = vmatpush1.bf16.msra.mxu0 %v290
      %356 = vmatprep.mubr.bf16.mxu0 %v119
      %357 = vmatmul.mubr.bf16.gmra.mrb[0].mxu0 %v118
      %v358 = vpop.f32.mrb[0].mxu0
      %v359 = vadd.f32 %v157, %v358
      %v360 = vpop.f32.mrb[0].mxu0
      %v361 = vadd.f32 %v161, %v360
      %v362 = vpop.f32.mrb[0].mxu0
      %v363 = vpop.f32.mrb[0].mxu0
      %364 = vdwg.mxu0
      %v365 = vxor.u32 %v359, 2147483648
      %v366 = vmul.f32 %v365, 1.442695
      %v367 = vpow.pop %v366
      %v368 = vadd.f32 %v367, 1.0
      %v369 = vrcp.pop %v368
      %v370 = vmul.f32 1.0, %v369
      %v371 = vxor.u32 %v361, 2147483648
      %v372 = vmul.f32 %v371, 1.442695
      %v373 = vpow.pop %v372
      %v374 = vadd.f32 %v373, 1.0
      %v375 = vrcp.pop %v374
      %v376 = vmul.f32 1.0, %v375
      %v377 = vld [vmem:[#allocation12] sm:$0xf]
      %v378 = vld [vmem:[#allocation12 + $0x4] sm:$0xf]
      %v379 = vld [vmem:[#allocation12 + $0x8] sm:$0xf]
      %v380 = vld [vmem:[#allocation12 + $0xc] sm:$0xf]
      %v381 = vld [vmem:[#allocation12 + $0x10] sm:$0xf]
      %v382 = vld [vmem:[#allocation12 + $0x14] sm:$0xf]
      %v383 = vld [vmem:[#allocation12 + $0x18] sm:$0xf]
      %v384 = vld [vmem:[#allocation12 + $0x1c] sm:$0xf]
      %v385 = vld [vmem:[#allocation12 + $0x20] sm:$0xf]
      %v386 = vld [vmem:[#allocation12 + $0x24] sm:$0xf]
      %v387 = vld [vmem:[#allocation12 + $0x28] sm:$0xf]
      %v388 = vld [vmem:[#allocation12 + $0x2c] sm:$0xf]
      %v389 = vld [vmem:[#allocation12 + $0x30] sm:$0xf]
      %v390 = vld [vmem:[#allocation12 + $0x34] sm:$0xf]
      %v391 = vld [vmem:[#allocation12 + $0x38] sm:$0xf]
      %v392 = vld [vmem:[#allocation12 + $0x3c] sm:$0xf]
      %v393 = vld [vmem:[%s5] sm:$0x1]
      %v395 = vlaneseq
      %v396 = vshrl.u32 %v395, 7
      %v397 = vsub.s32 0, %v396
      %v398 = vrot.slane %v393, %v397
      %v416 = vunpack.c.l.b16 %v377
      %v417 = vunpack.c.l.b16 %v378
      %v418 = vunpack.c.l.b16 %v379
      %v419 = vunpack.c.l.b16 %v380
      %v420 = vunpack.c.l.b16 %v381
      %v421 = vunpack.c.l.b16 %v382
      %v422 = vunpack.c.l.b16 %v383
      %v423 = vunpack.c.l.b16 %v384
      %v424 = vunpack.c.l.b16 %v385
      %v425 = vunpack.c.l.b16 %v386
      %v426 = vunpack.c.l.b16 %v387
      %v427 = vunpack.c.l.b16 %v388
      %v428 = vunpack.c.l.b16 %v389
      %v429 = vunpack.c.l.b16 %v390
      %v430 = vunpack.c.l.b16 %v391
      %v431 = vunpack.c.l.b16 %v392
      %v432 = vpack.c.b16 %v417, %v416
      %v433 = vpack.c.b16 %v419, %v418
      %v434 = vpack.c.b16 %v421, %v420
      %v435 = vpack.c.b16 %v423, %v422
      %v436 = vpack.c.b16 %v425, %v424
      %v437 = vpack.c.b16 %v427, %v426
      %v438 = vpack.c.b16 %v429, %v428
      %v439 = vpack.c.b16 %v431, %v430
      %448 = vmatprep.subr.bf16.mxu0 0
      %449 = vmatpush1.bf16.msra.mxu0 %v432
      %450 = vmatprep.subr.bf16.mxu0 0
      %451 = vmatpush1.bf16.msra.mxu0 %v433
      %452 = vmatprep.subr.bf16.mxu0 0
      %453 = vmatpush1.bf16.msra.mxu0 %v434
      %454 = vmatprep.subr.bf16.mxu0 0
      %455 = vmatpush1.bf16.msra.mxu0 %v435
      %456 = vmatprep.subr.bf16.mxu0 0
      %457 = vmatpush1.bf16.msra.mxu0 %v436
      %458 = vmatprep.subr.bf16.mxu0 0
      %459 = vmatpush1.bf16.msra.mxu0 %v437
      %460 = vmatprep.subr.bf16.mxu0 0
      %461 = vmatpush1.bf16.msra.mxu0 %v438
      %462 = vmatprep.subr.bf16.mxu0 0
      %463 = vmatpush1.bf16.msra.mxu0 %v439
      %464 = vmatprep.subr.bf16.mxu0 0
      %465 = vmatpush1.bf16.msra.mxu0 0
      %466 = vmatprep.subr.bf16.mxu0 0
      %467 = vmatpush1.bf16.msra.mxu0 0
      %468 = vmatprep.subr.bf16.mxu0 0
      %469 = vmatpush1.bf16.msra.mxu0 0
      %470 = vmatprep.subr.bf16.mxu0 0
      %471 = vmatpush1.bf16.msra.mxu0 0
      %472 = vmatprep.subr.bf16.mxu0 0
      %473 = vmatpush1.bf16.msra.mxu0 0
      %474 = vmatprep.subr.bf16.mxu0 0
      %475 = vmatpush1.bf16.msra.mxu0 0
      %476 = vmatprep.subr.bf16.mxu0 0
      %477 = vmatpush1.bf16.msra.mxu0 0
      %478 = vmatprep.subr.bf16.mxu0 0
      %479 = vmatpush1.bf16.msra.mxu0 0
      %480 = vmatprep.mubr.bf16.mxu0 0
      %481 = vmatmul.mubr.bf16.gmra.mrb[0].mxu0 %v118
      %v482 = vpop.f32.mrb[0].mxu0
      %v483 = vadd.f32 %v398, %v482
      %v484 = vpop.f32.mrb[0].mxu0
      %v485 = vpop.f32.mrb[0].mxu0
      %v486 = vpop.f32.mrb[0].mxu0
      %487 = vdwg.mxu0
      %v488 = vld [vmem:[#allocation14] sm:$0xf]
      %v489 = vld [vmem:[#allocation14 + $0x4] sm:$0xf]
      %v490 = vld [vmem:[#allocation14 + $0x8] sm:$0xf]
      %v491 = vld [vmem:[#allocation14 + $0xc] sm:$0xf]
      %v492 = vld [vmem:[#allocation14 + $0x10] sm:$0xf]
      %v493 = vld [vmem:[#allocation14 + $0x14] sm:$0xf]
      %v494 = vld [vmem:[#allocation14 + $0x18] sm:$0xf]
      %v495 = vld [vmem:[#allocation14 + $0x1c] sm:$0xf]
      %v496 = vld [vmem:[#allocation14 + $0x20] sm:$0xf]
      %v497 = vld [vmem:[#allocation14 + $0x24] sm:$0xf]
      %v498 = vld [vmem:[#allocation14 + $0x28] sm:$0xf]
      %v499 = vld [vmem:[#allocation14 + $0x2c] sm:$0xf]
      %v500 = vld [vmem:[#allocation14 + $0x30] sm:$0xf]
      %v501 = vld [vmem:[#allocation14 + $0x34] sm:$0xf]
      %v502 = vld [vmem:[#allocation14 + $0x38] sm:$0xf]
      %v503 = vld [vmem:[#allocation14 + $0x3c] sm:$0xf]
      %v504 = vld [vmem:[%s7] sm:$0x1]
      %v506 = vlaneseq
      %v507 = vshrl.u32 %v506, 7
      %v508 = vsub.s32 0, %v507
      %v509 = vrot.slane %v504, %v508
      %v527 = vunpack.c.l.b16 %v488
      %v528 = vunpack.c.l.b16 %v489
      %v529 = vunpack.c.l.b16 %v490
      %v530 = vunpack.c.l.b16 %v491
      %v531 = vunpack.c.l.b16 %v492
      %v532 = vunpack.c.l.b16 %v493
      %v533 = vunpack.c.l.b16 %v494
      %v534 = vunpack.c.l.b16 %v495
      %v535 = vunpack.c.l.b16 %v496
      %v536 = vunpack.c.l.b16 %v497
      %v537 = vunpack.c.l.b16 %v498
      %v538 = vunpack.c.l.b16 %v499
      %v539 = vunpack.c.l.b16 %v500
      %v540 = vunpack.c.l.b16 %v501
      %v541 = vunpack.c.l.b16 %v502
      %v542 = vunpack.c.l.b16 %v503
      %v543 = vpack.c.b16 %v528, %v527
      %v544 = vpack.c.b16 %v530, %v529
      %v545 = vpack.c.b16 %v532, %v531
      %v546 = vpack.c.b16 %v534, %v533
      %v547 = vpack.c.b16 %v536, %v535
      %v548 = vpack.c.b16 %v538, %v537
      %v549 = vpack.c.b16 %v540, %v539
      %v550 = vpack.c.b16 %v542, %v541
      %559 = vmatprep.subr.bf16.mxu0 0
      %560 = vmatpush1.bf16.msra.mxu0 %v543
      %561 = vmatprep.subr.bf16.mxu0 0
      %562 = vmatpush1.bf16.msra.mxu0 %v544
      %563 = vmatprep.subr.bf16.mxu0 0
      %564 = vmatpush1.bf16.msra.mxu0 %v545
      %565 = vmatprep.subr.bf16.mxu0 0
      %566 = vmatpush1.bf16.msra.mxu0 %v546
      %567 = vmatprep.subr.bf16.mxu0 0
      %568 = vmatpush1.bf16.msra.mxu0 %v547
      %569 = vmatprep.subr.bf16.mxu0 0
      %570 = vmatpush1.bf16.msra.mxu0 %v548
      %571 = vmatprep.subr.bf16.mxu0 0
      %572 = vmatpush1.bf16.msra.mxu0 %v549
      %573 = vmatprep.subr.bf16.mxu0 0
      %574 = vmatpush1.bf16.msra.mxu0 %v550
      %575 = vmatprep.subr.bf16.mxu0 0
      %576 = vmatpush1.bf16.msra.mxu0 0
      %577 = vmatprep.subr.bf16.mxu0 0
      %578 = vmatpush1.bf16.msra.mxu0 0
      %579 = vmatprep.subr.bf16.mxu0 0
      %580 = vmatpush1.bf16.msra.mxu0 0
      %581 = vmatprep.subr.bf16.mxu0 0
      %582 = vmatpush1.bf16.msra.mxu0 0
      %583 = vmatprep.subr.bf16.mxu0 0
      %584 = vmatpush1.bf16.msra.mxu0 0
      %585 = vmatprep.subr.bf16.mxu0 0
      %586 = vmatpush1.bf16.msra.mxu0 0
      %587 = vmatprep.subr.bf16.mxu0 0
      %588 = vmatpush1.bf16.msra.mxu0 0
      %589 = vmatprep.subr.bf16.mxu0 0
      %590 = vmatpush1.bf16.msra.mxu0 0
      %591 = vmatprep.mubr.bf16.mxu0 0
      %592 = vmatmul.mubr.bf16.gmra.mrb[0].mxu0 %v119
      %v593 = vpop.f32.mrb[0].mxu0
      %v594 = vadd.f32 %v509, %v593
      %v595 = vpop.f32.mrb[0].mxu0
      %v596 = vpop.f32.mrb[0].mxu0
      %v597 = vpop.f32.mrb[0].mxu0
      %598 = vdwg.mxu0
      %v599 = vmul.f32 %v370, %v594
      %v600 = vadd.f32 %v483, %v599
      %v601 = vtanh.pop %v600
      %v602 = vsub.f32 1.0, %v376
      %v603 = vmul.f32 %v602, %v601
      %v604 = vmul.f32 %v376, %v117
      %v605 = vadd.f32 %v603, %v604
      %606 = vst.msk [vmem:[#allocation16] sm:$0xf] %vm112, %v605
      %v607 = vpack.c.bf16 %v605, %v605
      %608 = vst.msk [vmem:[#allocation3] sm:$0xf] %vm112, %v607
      %vm609 = vcmask 7168
      %610 = vst.msk [vmem:[#allocation4] sm:$0xff] %vm609, -inf
      %611 = vst.msk [vmem:[#allocation5] sm:$0xff] %vm609, 0.0
    $region65: #{tpu_custom_call.1} parent=1 // pred_fallthru
      _
    %v612 = vld [vmem:[#allocation3] sm:$0xf]
    %v613 = vld [vmem:[%s8] sm:$0xf]
    %v614 = vld [vmem:[%s8 + $0x4] sm:$0xf]
    %v615 = vld [vmem:[%s9] sm:$0x1]
    %v617 = vlaneseq
    %v618 = vshrl.u32 %v617, 7
    %v619 = vsub.s32 0, %v618
    %v620 = vrot.slane %v615, %v619
    %v624 = vunpack.c.l.b16 %v613
    %v625 = vunpack.c.l.b16 %v614
    %v626 = vpack.c.b16 %v625, %v624
    %vm628 = vcmask 130048
    %v630 = vsel %vm628, %v612, 0
    %632 = vmatprep.subr.bf16.mxu0 0
    %633 = vmatpush1.bf16.msra.mxu0 %v626
    %634 = vmatprep.subr.bf16.mxu0 0
    %635 = vmatpush1.bf16.msra.mxu0 0
    %636 = vmatprep.subr.bf16.mxu0 0
    %637 = vmatpush1.bf16.msra.mxu0 0
    %638 = vmatprep.subr.bf16.mxu0 0
    %639 = vmatpush1.bf16.msra.mxu0 0
    %640 = vmatprep.subr.bf16.mxu0 0
    %641 = vmatpush1.bf16.msra.mxu0 0
    %642 = vmatprep.subr.bf16.mxu0 0
    %643 = vmatpush1.bf16.msra.mxu0 0
    %644 = vmatprep.subr.bf16.mxu0 0
    %645 = vmatpush1.bf16.msra.mxu0 0
    %646 = vmatprep.subr.bf16.mxu0 0
    %647 = vmatpush1.bf16.msra.mxu0 0
    %648 = vmatprep.subr.bf16.mxu0 0
    %649 = vmatpush1.bf16.msra.mxu0 0
    %650 = vmatprep.subr.bf16.mxu0 0
    %651 = vmatpush1.bf16.msra.mxu0 0
    %652 = vmatprep.subr.bf16.mxu0 0
    %653 = vmatpush1.bf16.msra.mxu0 0
    %654 = vmatprep.subr.bf16.mxu0 0
    %655 = vmatpush1.bf16.msra.mxu0 0
    %656 = vmatprep.subr.bf16.mxu0 0
    %657 = vmatpush1.bf16.msra.mxu0 0
    %658 = vmatprep.subr.bf16.mxu0 0
    %659 = vmatpush1.bf16.msra.mxu0 0
    %660 = vmatprep.subr.bf16.mxu0 0
    %661 = vmatpush1.bf16.msra.mxu0 0
    %662 = vmatprep.subr.bf16.mxu0 0
    %663 = vmatpush1.bf16.msra.mxu0 0
    %664 = vmatprep.mubr.bf16.mxu0 0
    %665 = vmatmul.mubr.bf16.gmra.mrb[0].mxu0 %v630
    %v666 = vpop.f32.mrb[0].mxu0
    %v667 = vadd.f32 %v620, %v666
    %v668 = vpop.f32.mrb[0].mxu0
    %v669 = vpop.f32.mrb[0].mxu0
    %v670 = vpop.f32.mrb[0].mxu0
    %671 = vdwg.mxu0
    %v672 = vld [vmem:[#allocation4] sm:$0xff]
    %673 = vmax.xlane.f32.xlu0 %v667
    %v674 = vpop.xlane.xlu0 %673
    %v675 = vmax.f32 %v672, %v674
    %v676 = vld [vmem:[#allocation5] sm:$0xff]
    %v677 = vsub.f32 %v672, %v675
    %v678 = vmul.f32 %v677, 1.442695
    %v679 = vpow.pop %v678
    %v680 = vmul.f32 %v676, %v679
    %682 = vset.pattern.permute.xlu0 0
    %683 = vperm.xlu0 %682, %v675
    %v684 = vpop.permute.xlu0 %683
    %v686 = vsub.f32 %v667, %v684
    %v687 = vmul.f32 %v686, 1.442695
    %v688 = vpow.pop %v687
    %689 = vadd.xlane.f32.xlu0 %v688
    %v690 = vpop.xlane.xlu0 %689
    %v691 = vadd.f32 %v680, %v690
    %vm692 = vcmask 7168
    %693 = vst.msk [vmem:[#allocation5] sm:$0xff] %vm692, %v691
    %694 = vst.msk [vmem:[#allocation4] sm:$0xff] %vm692, %v675
    %s695 = smul.u32 0, 128
    %s696 = sshra.s32 %s695, 7
    %s697 = sand.u32 %s695, 127
    %s698 = scalar_lea.vmem [#allocation15], %s696
    %699 = vst [vmem:[%s698] sm:$0xff] %v667
    // Predicated region
    $region66: #{tpu_custom_call.1} parent=1 // pred_check
      %p700 = pneg %p105
    $region67: #{tpu_custom_call.1} parent=1 // pred_check_branch
      %702 = sbr.rel (%p700) target = $region69
    $region68: #{tpu_custom_call.1} parent=1 // pred_region
      %v703 = vld [vmem:[#allocation4] sm:$0xff]
      %v704 = vld [vmem:[#allocation5] sm:$0xff]
      %v705 = vlog2.pop %v704
      %v706 = vmul.f32 %v705, 0.6931472
      %v707 = vadd.f32 %v703, %v706
      %708 = vst.msk [vmem:[%s11] sm:$0xff] %vm692, %v707
      %v709 = vld [vmem:[#allocation15] sm:$0xff]
      %711 = vset.pattern.permute.xlu0 0
      %712 = vperm.xlu0 %711, %v707
      %v713 = vpop.permute.xlu0 %712
      %v715 = vsub.f32 %v709, %v713
      %716 = vst [vmem:[#allocation15] sm:$0xff] %v715
    $region69: #{tpu_custom_call.1} parent=1 // pred_fallthru
      _
    // Predicated region
    $region70: #{tpu_custom_call.1} parent=1 // pred_check
      _
    $region71: #{tpu_custom_call.1} parent=1 // pred_check_branch
      %718 = sbr.rel (0) target = $region73
    $region72: #{tpu_custom_call.1} parent=1 // pred_region
      %s720 = ssub.s32 128, 128
      %721 = vsyncadd [#allocation8], %s720
      %s723 = sshll.u32 [#allocation15], 4
      %s724 = int_to_ptr.vmem [resolvable:$true] %s723
      %726 = dma.vmem_to_hbm [thread:$0]  %s724, 128, %s10, [#allocation8]
    $region73: #{tpu_custom_call.1} parent=1 // pred_fallthru
      _
    // Predicated region
    $region74: #{tpu_custom_call.1} parent=1 // pred_check
      _
    $region75: #{tpu_custom_call.1} parent=1 // pred_check_branch
      %728 = sbr.rel (0) target = $region77
    $region76: #{tpu_custom_call.1} parent=1 // pred_region
      _
    $region77: #{tpu_custom_call.1} parent=1 // pred_fallthru
      _
    // Predicated region
    $region78: #{tpu_custom_call.1} parent=1 // pred_check
      _
    $region79: #{tpu_custom_call.1} parent=1 // pred_check_branch
      %730 = sbr.rel (0) target = $region81
    $region80: #{tpu_custom_call.1} parent=1 // pred_region
      %s732 = ssub.s32 64, 64
      %733 = vsyncadd [#allocation17], %s732
      %s735 = sshll.u32 [#allocation16], 4
      %s736 = int_to_ptr.vmem [resolvable:$true] %s735
      %738 = dma.vmem_to_hbm [thread:$0]  %s736, 64, %s12, [#allocation17]
    $region81: #{tpu_custom_call.1} parent=1 // pred_fallthru
      _
    // Predicated region
    $region82: #{tpu_custom_call.1} parent=1 // pred_check
      _
    $region83: #{tpu_custom_call.1} parent=1 // pred_check_branch
      %740 = sbr.rel (0) target = $region85
    $region84: #{tpu_custom_call.1} parent=1 // pred_region
      %741 = dma.done [#allocation8], 128
    $region85: #{tpu_custom_call.1} parent=1 // pred_fallthru
      _
    // Predicated region
    $region86: #{tpu_custom_call.1} parent=1 // pred_check
      _
    $region87: #{tpu_custom_call.1} parent=1 // pred_check_branch
      %743 = sbr.rel (0) target = $region89
    $region88: #{tpu_custom_call.1} parent=1 // pred_region
      _
    $region89: #{tpu_custom_call.1} parent=1 // pred_fallthru
      _
    // Predicated region
    $region90: #{tpu_custom_call.1} parent=1 // pred_check
      _
    $region91: #{tpu_custom_call.1} parent=1 // pred_check_branch
      %745 = sbr.rel (0) target = $region93
    $region92: #{tpu_custom_call.1} parent=1 // pred_region
      %746 = dma.done [#allocation17], 64
    $region93: #{tpu_custom_call.1} parent=1 // pred_fallthru
      _
    %747 = vsyncpa [#allocation7], 1
    %748 = vsyncpa [#allocation10], 1
    %749 = vsyncpa [#allocation13], 1
    %750 = vsyncpa [#allocation8], 1
    %751 = vsyncpa [#allocation17], 1

</llo_original>
